<compile_context>
chip_gen: v7x
topology: tpu7x:2x2x1
jax: 0.10.0
libtpu: 0.0.40
codegen_flags: <defaults>
</compile_context>

<pallas_src>
from functools import partial

import numpy as np
import jax
import jax.numpy as jnp
from jax.experimental import pallas as pl
from jax.experimental.pallas import tpu as pltpu

SUB = 8          # sublane tile (rows)
LANE = 128       # lane tile (cols)
_UNROLL_MAX = 8  # static unroll threshold for the packed layer stack


def _pad2(a, rows, cols):
    out = jnp.zeros((rows, cols), jnp.float32)
    return out.at[: a.shape[0], : a.shape[1]].set(a.astype(jnp.float32))


# ---------------------------------------------------------------- kernel ----
def mlp_chain_kernel(x_ref, w1_ref, b1_ref, ws_ref, bs_ref, o_ref,
                     xscr_ref, wscr_ref):
    # Zero the padding scratches ONCE (stale VMEM may hold NaN/Inf; NaN*0=NaN).
    xscr_ref[...] = jnp.zeros_like(xscr_ref)
    wscr_ref[...] = jnp.zeros_like(wscr_ref)

    # Place the flattened input in row 0 of an (8, cin) staging tile.
    xscr_ref[0:1, :] = x_ref[...]

    # First linear: (8, cin) @ (cin, 128) + (1, 128) broadcast over sublanes.
    h = jnp.dot(xscr_ref[...], w1_ref[...],
                preferred_element_type=jnp.float32) + b1_ref[...]

    n_stack = ws_ref.shape[0]
    if n_stack <= _UNROLL_MAX:
        # Small stacks: static unroll (LLO scheduler visibility).
        for i in range(n_stack):
            wscr_ref[0:SUB, :] = ws_ref[i]          # expand (8,128) slab
            h = jnp.dot(h, wscr_ref[...],
                        preferred_element_type=jnp.float32) + bs_ref[i]
    else:
        # Large stacks: rolled loop with dynamic first-axis indexing.
        def body(i, h):
            wscr_ref[0:SUB, :] = ws_ref[i]
            return jnp.dot(h, wscr_ref[...],
                           preferred_element_type=jnp.float32) + bs_ref[i]
        h = jax.lax.fori_loop(0, n_stack, body, h)

    o_ref[...] = h


# ------------------------------------------------------------- parameters ---
def init_linear(key, in_f, out_f):
    """Deterministic init matching nn.Linear's U(-1/sqrt(in), 1/sqrt(in))."""
    kw, kb = jax.random.split(key)
    bound = 1.0 / np.sqrt(in_f)
    W = jax.random.uniform(kw, (out_f, in_f), jnp.float32, -bound, bound)
    b = jax.random.uniform(kb, (out_f,), jnp.float32, -bound, bound)
    return W, b


def make_params(key, num_layers, input_size, hidden=5, out_dim=2):
    keys = jax.random.split(key, num_layers + 2)
    w1, b1 = init_linear(keys[0], input_size, hidden)
    middle = [init_linear(keys[1 + i], hidden, hidden) for i in range(num_layers)]
    wo, bo = init_linear(keys[-1], hidden, out_dim)
    return (w1, b1), middle, (wo, bo)


def prepack(params, fold_chain=False):
    """One-time padding / packing of weights into kernel-ready tiles.

    fold_chain=True multiplies the middle 5x5 chain and the 5x2 output into a
    single effective matrix at prepack time (2 dependent matmuls in the
    kernel, regardless of num_layers). Changes f32 summation order only.
    """
    (w1, b1), middle, (wo, bo) = params
    input_size = w1.shape[1]
    hidden = w1.shape[0]
    out_dim = wo.shape[0]

    if fold_chain:
        W_eff = jnp.eye(hidden, dtype=jnp.float32)
        b_eff = jnp.zeros((hidden,), jnp.float32)
        for (w, b) in middle:
            W_eff = w.astype(jnp.float32) @ W_eff
            b_eff = w.astype(jnp.float32) @ b_eff + b.astype(jnp.float32)
        W_eff = wo.astype(jnp.float32) @ W_eff
        b_eff = wo.astype(jnp.float32) @ b_eff + bo.astype(jnp.float32)
        mats = [W_eff.T]
        bias = [b_eff]
    else:
        mats = [w.T for (w, _) in middle] + [wo.T]
        bias = [b for (_, b) in middle] + [bo]

    # First layer: (input_size, 128) — no 128-lane cin floor.
    w1_pad = _pad2(w1.T, input_size, LANE)
    b1_pad = _pad2(b1[None, :], 1, LANE)

    # Middle/output stack: only 8 sublanes per slab (real rows <= 5).
    w_stack = jnp.stack([_pad2(m, SUB, LANE) for m in mats])         # (n,8,128)
    b_stack = jnp.stack([_pad2(b[None, :], 1, LANE) for b in bias])  # (n,1,128)

    packed = {"w1": w1_pad, "b1": b1_pad, "ws": w_stack, "bs": b_stack}
    return packed, input_size, out_dim


# ---------------------------------------------------------------- forward ---
@partial(jax.jit, static_argnames=("out_dim",))
def test_net_forward(x, packed, out_dim):
    w1_pad = packed["w1"]
    b1_pad = packed["b1"]
    w_stack = packed["ws"]
    b_stack = packed["bs"]

    cin = w1_pad.shape[0]
    n_stack = w_stack.shape[0]

    # Flatten exactly like x.view(-1); free reshape, no host-side pad scatter.
    x_row = x.reshape(1, -1).astype(jnp.float32)   # (1, input_size)

    flops = 2 * SUB * LANE * (cin + n_stack * LANE)
    bytes_accessed = 4 * (
        cin                              # x row
        + cin * LANE + LANE              # w1 + b1
        + n_stack * (SUB * LANE + LANE)  # packed (8,128) slabs + biases
        + SUB * LANE                     # output tile
    )

    vmem = pl.BlockSpec(memory_space=pltpu.MemorySpace.VMEM)
    out_pad = pl.pallas_call(
        mlp_chain_kernel,
        out_shape=jax.ShapeDtypeStruct((SUB, LANE), jnp.float32),
        in_specs=[vmem] * 5,
        out_specs=vmem,
        scratch_shapes=[
            pltpu.VMEM((SUB, cin), jnp.float32),    # input staging tile
            pltpu.VMEM((LANE, LANE), jnp.float32),  # weight-slab expansion
        ],
        cost_estimate=pl.CostEstimate(
            flops=flops, transcendentals=0, bytes_accessed=bytes_accessed
        ),
    )(x_row, w1_pad, b1_pad, w_stack, b_stack)

    # Only row 0 / first out_dim lanes are real.
    return out_pad[0, :out_dim]


def reference_forward(x, params):
    (w1, b1), middle, (wo, bo) = params
    h = x.reshape(-1).astype(jnp.float32)
    h = h @ w1.T + b1
    for (w, b) in middle:
        h = h @ w.T + b
    return h @ wo.T + bo


# ------------------------------------------------------------------ main ----
if __name__ == "__main__":
    key = jax.random.PRNGKey(0)
    kx, kp0, kp1 = jax.random.split(key, 3)

    # input tensor of shape (2, 4, 4) -> view(-1) gives input_size = 32
    input_shape = (2, 4, 4)
    input_size = int(np.prod(input_shape))
    x = jax.random.normal(kx, input_shape, jnp.float32)

    # case 1: num_layers = 3, bit-faithful layer-by-layer path
    params3 = make_params(kp0, num_layers=3, input_size=input_size)
    packed3, _, out_dim3 = prepack(params3)
    out3 = jax.block_until_ready(test_net_forward(x, packed3, out_dim3))
    ref3 = reference_forward(x, params3)
    np.testing.assert_allclose(np.asarray(out3), np.asarray(ref3), rtol=1e-5, atol=1e-5)
    assert out3.shape == (2,)

    # case 2: num_layers = 0 (stack always contains the output layer)
    params0 = make_params(kp1, num_layers=0, input_size=input_size)
    packed0, _, out_dim0 = prepack(params0)
    out0 = jax.block_until_ready(test_net_forward(x, packed0, out_dim0))
    ref0 = reference_forward(x, params0)
    np.testing.assert_allclose(np.asarray(out0), np.asarray(ref0), rtol=1e-5, atol=1e-5)
    assert out0.shape == (2,)

    # case 3: folded-chain prepack (2 matmuls total; f32 summation order differs)
    packedf, _, out_dimf = prepack(params3, fold_chain=True)
    outf = jax.block_until_ready(test_net_forward(x, packedf, out_dimf))
    np.testing.assert_allclose(np.asarray(outf), np.asarray(ref3), rtol=1e-4, atol=1e-4)

    # case 4: large num_layers -> exercises the rolled fori_loop path in-kernel
    params12 = make_params(kp1, num_layers=12, input_size=input_size)
    packed12, _, out_dim12 = prepack(params12)
    out12 = jax.block_until_ready(test_net_forward(x, packed12, out_dim12))
    ref12 = reference_forward(x, params12)
    np.testing.assert_allclose(np.asarray(out12), np.asarray(ref12), rtol=1e-5, atol=1e-5)

    print("KERNEL_OK")
</pallas_src>

<mosaic_0001>
module attributes {stable_mosaic.version = 11 : i64} {
  func.func @mlp_chain_kernel(%arg0: memref<1x32xf32, #tpu.memory_space<vmem>>, %arg1: memref<32x128xf32, #tpu.memory_space<vmem>>, %arg2: memref<1x128xf32, #tpu.memory_space<vmem>>, %arg3: memref<4x8x128xf32, #tpu.memory_space<vmem>>, %arg4: memref<4x1x128xf32, #tpu.memory_space<vmem>>, %arg5: memref<8x128xf32, #tpu.memory_space<vmem>>, %arg6: memref<8x32xf32, #tpu.memory_space<vmem>>, %arg7: memref<128x128xf32, #tpu.memory_space<vmem>>) attributes {dimension_semantics = [], scalar_prefetch = 0 : i64, scratch_operands = 2 : i64, tpu.core_type = #tpu.core_type<tc>} {
    %cst = arith.constant 0.000000e+00 : f32
    %0 = vector.broadcast %cst : f32 to vector<8x32xf32>
    %c0 = arith.constant 0 : index
    %c0_0 = arith.constant 0 : index
    %1 = vector.load %arg6[%c0, %c0_0] : memref<8x32xf32, #tpu.memory_space<vmem>>, vector<8x32xf32>
    tpu.vector_store %arg6[%c0, %c0_0], %0 {strides = array<i32>} : memref<8x32xf32, #tpu.memory_space<vmem>>, vector<8x32xf32>,
    %cst_1 = arith.constant 0.000000e+00 : f32
    %2 = vector.broadcast %cst_1 : f32 to vector<128x128xf32>
    %c0_2 = arith.constant 0 : index
    %c0_3 = arith.constant 0 : index
    %3 = vector.load %arg7[%c0_2, %c0_3] : memref<128x128xf32, #tpu.memory_space<vmem>>, vector<128x128xf32>
    tpu.vector_store %arg7[%c0_2, %c0_3], %2 {strides = array<i32>} : memref<128x128xf32, #tpu.memory_space<vmem>>, vector<128x128xf32>,
    %c0_4 = arith.constant 0 : index
    %c0_5 = arith.constant 0 : index
    %4 = vector.load %arg0[%c0_4, %c0_5] : memref<1x32xf32, #tpu.memory_space<vmem>>, vector<1x32xf32>
    %c0_6 = arith.constant 0 : index
    %c0_7 = arith.constant 0 : index
    %5 = vector.load %arg6[%c0_6, %c0_7] : memref<8x32xf32, #tpu.memory_space<vmem>>, vector<1x32xf32>
    tpu.vector_store %arg6[%c0_6, %c0_7], %4 {strides = array<i32>} : memref<8x32xf32, #tpu.memory_space<vmem>>, vector<1x32xf32>,
    %c0_8 = arith.constant 0 : index
    %c0_9 = arith.constant 0 : index
    %6 = vector.load %arg6[%c0_8, %c0_9] : memref<8x32xf32, #tpu.memory_space<vmem>>, vector<8x32xf32>
    %c0_10 = arith.constant 0 : index
    %c0_11 = arith.constant 0 : index
    %7 = vector.load %arg1[%c0_10, %c0_11] : memref<32x128xf32, #tpu.memory_space<vmem>>, vector<32x128xf32>
    %cst_12 = arith.constant dense<0.000000e+00> : vector<8x128xf32>
    %8 = tpu.matmul %6, %7, %cst_12 {dimension_numbers = #tpu.dot_dimension_numbers<[1], [0], [0], [1], [0, 0, 1, 1], [], []>} : vector<8x32xf32>, vector<32x128xf32>, vector<8x128xf32> -> vector<8x128xf32>
    %c0_13 = arith.constant 0 : index
    %c0_14 = arith.constant 0 : index
    %9 = vector.load %arg2[%c0_13, %c0_14] : memref<1x128xf32, #tpu.memory_space<vmem>>, vector<1x128xf32>
    %10 = vector.broadcast %9 : vector<1x128xf32> to vector<8x128xf32>
    %11 = arith.addf %8, %10 : vector<8x128xf32>
    %c0_15 = arith.constant 0 : index
    %c0_16 = arith.constant 0 : index
    %c0_17 = arith.constant 0 : index
    %12 = vector.load %arg3[%c0_15, %c0_16, %c0_17] : memref<4x8x128xf32, #tpu.memory_space<vmem>>, vector<1x8x128xf32>
    %13 = vector.shape_cast %12 : vector<1x8x128xf32> to vector<8x128xf32>
    %c0_18 = arith.constant 0 : index
    %c0_19 = arith.constant 0 : index
    %14 = vector.load %arg7[%c0_18, %c0_19] : memref<128x128xf32, #tpu.memory_space<vmem>>, vector<8x128xf32>
    tpu.vector_store %arg7[%c0_18, %c0_19], %13 {strides = array<i32>} : memref<128x128xf32, #tpu.memory_space<vmem>>, vector<8x128xf32>,
    %c0_20 = arith.constant 0 : index
    %c0_21 = arith.constant 0 : index
    %15 = vector.load %arg7[%c0_20, %c0_21] : memref<128x128xf32, #tpu.memory_space<vmem>>, vector<128x128xf32>
    %cst_22 = arith.constant dense<0.000000e+00> : vector<8x128xf32>
    %16 = tpu.matmul %11, %15, %cst_22 {dimension_numbers = #tpu.dot_dimension_numbers<[1], [0], [0], [1], [0, 0, 1, 1], [], []>} : vector<8x128xf32>, vector<128x128xf32>, vector<8x128xf32> -> vector<8x128xf32>
    %c0_23 = arith.constant 0 : index
    %c0_24 = arith.constant 0 : index
    %c0_25 = arith.constant 0 : index
    %17 = vector.load %arg4[%c0_23, %c0_24, %c0_25] : memref<4x1x128xf32, #tpu.memory_space<vmem>>, vector<1x1x128xf32>
    %18 = vector.shape_cast %17 : vector<1x1x128xf32> to vector<1x128xf32>
    %19 = vector.broadcast %18 : vector<1x128xf32> to vector<8x128xf32>
    %20 = arith.addf %16, %19 : vector<8x128xf32>
    %c1 = arith.constant 1 : index
    %c0_26 = arith.constant 0 : index
    %c0_27 = arith.constant 0 : index
    %21 = vector.load %arg3[%c1, %c0_26, %c0_27] : memref<4x8x128xf32, #tpu.memory_space<vmem>>, vector<1x8x128xf32>
    %22 = vector.shape_cast %21 : vector<1x8x128xf32> to vector<8x128xf32>
    %c0_28 = arith.constant 0 : index
    %c0_29 = arith.constant 0 : index
    %23 = vector.load %arg7[%c0_28, %c0_29] : memref<128x128xf32, #tpu.memory_space<vmem>>, vector<8x128xf32>
    tpu.vector_store %arg7[%c0_28, %c0_29], %22 {strides = array<i32>} : memref<128x128xf32, #tpu.memory_space<vmem>>, vector<8x128xf32>,
    %c0_30 = arith.constant 0 : index
    %c0_31 = arith.constant 0 : index
    %24 = vector.load %arg7[%c0_30, %c0_31] : memref<128x128xf32, #tpu.memory_space<vmem>>, vector<128x128xf32>
    %cst_32 = arith.constant dense<0.000000e+00> : vector<8x128xf32>
    %25 = tpu.matmul %20, %24, %cst_32 {dimension_numbers = #tpu.dot_dimension_numbers<[1], [0], [0], [1], [0, 0, 1, 1], [], []>} : vector<8x128xf32>, vector<128x128xf32>, vector<8x128xf32> -> vector<8x128xf32>
    %c1_33 = arith.constant 1 : index
    %c0_34 = arith.constant 0 : index
    %c0_35 = arith.constant 0 : index
    %26 = vector.load %arg4[%c1_33, %c0_34, %c0_35] : memref<4x1x128xf32, #tpu.memory_space<vmem>>, vector<1x1x128xf32>
    %27 = vector.shape_cast %26 : vector<1x1x128xf32> to vector<1x128xf32>
    %28 = vector.broadcast %27 : vector<1x128xf32> to vector<8x128xf32>
    %29 = arith.addf %25, %28 : vector<8x128xf32>
    %c2 = arith.constant 2 : index
    %c0_36 = arith.constant 0 : index
    %c0_37 = arith.constant 0 : index
    %30 = vector.load %arg3[%c2, %c0_36, %c0_37] : memref<4x8x128xf32, #tpu.memory_space<vmem>>, vector<1x8x128xf32>
    %31 = vector.shape_cast %30 : vector<1x8x128xf32> to vector<8x128xf32>
    %c0_38 = arith.constant 0 : index
    %c0_39 = arith.constant 0 : index
    %32 = vector.load %arg7[%c0_38, %c0_39] : memref<128x128xf32, #tpu.memory_space<vmem>>, vector<8x128xf32>
    tpu.vector_store %arg7[%c0_38, %c0_39], %31 {strides = array<i32>} : memref<128x128xf32, #tpu.memory_space<vmem>>, vector<8x128xf32>,
    %c0_40 = arith.constant 0 : index
    %c0_41 = arith.constant 0 : index
    %33 = vector.load %arg7[%c0_40, %c0_41] : memref<128x128xf32, #tpu.memory_space<vmem>>, vector<128x128xf32>
    %cst_42 = arith.constant dense<0.000000e+00> : vector<8x128xf32>
    %34 = tpu.matmul %29, %33, %cst_42 {dimension_numbers = #tpu.dot_dimension_numbers<[1], [0], [0], [1], [0, 0, 1, 1], [], []>} : vector<8x128xf32>, vector<128x128xf32>, vector<8x128xf32> -> vector<8x128xf32>
    %c2_43 = arith.constant 2 : index
    %c0_44 = arith.constant 0 : index
    %c0_45 = arith.constant 0 : index
    %35 = vector.load %arg4[%c2_43, %c0_44, %c0_45] : memref<4x1x128xf32, #tpu.memory_space<vmem>>, vector<1x1x128xf32>
    %36 = vector.shape_cast %35 : vector<1x1x128xf32> to vector<1x128xf32>
    %37 = vector.broadcast %36 : vector<1x128xf32> to vector<8x128xf32>
    %38 = arith.addf %34, %37 : vector<8x128xf32>
    %c3 = arith.constant 3 : index
    %c0_46 = arith.constant 0 : index
    %c0_47 = arith.constant 0 : index
    %39 = vector.load %arg3[%c3, %c0_46, %c0_47] : memref<4x8x128xf32, #tpu.memory_space<vmem>>, vector<1x8x128xf32>
    %40 = vector.shape_cast %39 : vector<1x8x128xf32> to vector<8x128xf32>
    %c0_48 = arith.constant 0 : index
    %c0_49 = arith.constant 0 : index
    %41 = vector.load %arg7[%c0_48, %c0_49] : memref<128x128xf32, #tpu.memory_space<vmem>>, vector<8x128xf32>
    tpu.vector_store %arg7[%c0_48, %c0_49], %40 {strides = array<i32>} : memref<128x128xf32, #tpu.memory_space<vmem>>, vector<8x128xf32>,
    %c0_50 = arith.constant 0 : index
    %c0_51 = arith.constant 0 : index
    %42 = vector.load %arg7[%c0_50, %c0_51] : memref<128x128xf32, #tpu.memory_space<vmem>>, vector<128x128xf32>
    %cst_52 = arith.constant dense<0.000000e+00> : vector<8x128xf32>
    %43 = tpu.matmul %38, %42, %cst_52 {dimension_numbers = #tpu.dot_dimension_numbers<[1], [0], [0], [1], [0, 0, 1, 1], [], []>} : vector<8x128xf32>, vector<128x128xf32>, vector<8x128xf32> -> vector<8x128xf32>
    %c3_53 = arith.constant 3 : index
    %c0_54 = arith.constant 0 : index
    %c0_55 = arith.constant 0 : index
    %44 = vector.load %arg4[%c3_53, %c0_54, %c0_55] : memref<4x1x128xf32, #tpu.memory_space<vmem>>, vector<1x1x128xf32>
    %45 = vector.shape_cast %44 : vector<1x1x128xf32> to vector<1x128xf32>
    %46 = vector.broadcast %45 : vector<1x128xf32> to vector<8x128xf32>
    %47 = arith.addf %43, %46 : vector<8x128xf32>
    %c0_56 = arith.constant 0 : index
    %c0_57 = arith.constant 0 : index
    %48 = vector.load %arg5[%c0_56, %c0_57] : memref<8x128xf32, #tpu.memory_space<vmem>>, vector<8x128xf32>
    tpu.vector_store %arg5[%c0_56, %c0_57], %47 {strides = array<i32>} : memref<8x128xf32, #tpu.memory_space<vmem>>, vector<8x128xf32>,
    return
  }
}

</mosaic_0001>

<llo_original>
// kernel: test_net_forward.1
$region0: #{test_net_forward.1}
  #allocation0 [shape = 'u32[]', space=smem, size = 0x4, offset = 0x4, fixed_abs, tag = 'smem constant byte address 0x4 - core index']
  #allocation1 [shape = 'u32[144,128]{1,0:T(1,128)}', space=vmem, size = 0x12000, scoped, tag = 'internal scratch']
  #allocation2 [shape = 'f32[8,32]{1,0:T(8,128)}', space=vmem, size = 0x1000, scoped, tag = 'scratch operand']
  #allocation3 [shape = 'f32[128,128]{1,0:T(8,128)}', space=vmem, size = 0x10000, scoped, tag = 'scratch operand']
  %s0 = inlined_call_operand.vmem [shape: f32[1,32], index: 0, kind: input, shape index: {}]
  %s1 = inlined_call_operand.hbm [shape: f32[32,128], index: 1, kind: input, shape index: {}]
  %s2 = inlined_call_operand.vmem [shape: f32[1,128], index: 2, kind: input, shape index: {}]
  %s3 = inlined_call_operand.hbm [shape: f32[4,8,128], index: 3, kind: input, shape index: {}]
  %s4 = inlined_call_operand.vmem [shape: f32[4,1,128], index: 4, kind: input, shape index: {}]
  %s5 = inlined_call_operand.vmem [shape: f32[8,128], index: 5, kind: output, shape index: {}]
  %s6 = sld [smem:[#allocation0]]
  $region38: #{test_net_forward.1} parent=0
    _
  %s8 = ssub.s32 1, %s6
  %s9 = scalar_select 0, %s8, %s6
  $region1: #{test_net_forward.1} parent=0
    #allocation4 [shape = 'u8[16384]{0}', space=vmem, size = 0x4000, scoped, tag = 'input window, operand 1, single buffered']
    #allocation5 [shape = 's32[1]{0}', space=sflag, size = 0x4, scoped, tag = 'scoped memory for test_net_forward.1']
    #allocation6 [shape = 'u8[16384]{0}', space=vmem, size = 0x4000, scoped, tag = 'input window, operand 3, single buffered']
    #allocation7 [shape = 's32[1]{0}', space=sflag, size = 0x4, scoped, tag = 'scoped memory for test_net_forward.1']
    %10 = vsyncpa [#allocation5], 0
    %11 = vsyncpa [#allocation7], 0
    // Predicated region
    $region2: #{test_net_forward.1} parent=1 // pred_check
      _
    $region3: #{test_net_forward.1} parent=1 // pred_check_branch
      %13 = sbr.rel (0) target = $region5
    $region4: #{test_net_forward.1} parent=1 // pred_region
      _
    $region5: #{test_net_forward.1} parent=1 // pred_fallthru
      _
    // Predicated region
    $region6: #{test_net_forward.1} parent=1 // pred_check
      _
    $region7: #{test_net_forward.1} parent=1 // pred_check_branch
      %15 = sbr.rel (0) target = $region9
    $region8: #{test_net_forward.1} parent=1 // pred_region
      %s17 = ssub.s32 512, 512
      %18 = vsyncadd [#allocation5], %s17
      %s19 = sshll.u32 [#allocation4], 4
      %s20 = int_to_ptr.vmem [resolvable:$true] %s19
      %25 = dma.hbm_to_vmem [thread:$0]  %s1, 512, %s20, [#allocation5], 128, 128, 8
    $region9: #{test_net_forward.1} parent=1 // pred_fallthru
      _
    // Predicated region
    $region10: #{test_net_forward.1} parent=1 // pred_check
      _
    $region11: #{test_net_forward.1} parent=1 // pred_check_branch
      %27 = sbr.rel (0) target = $region13
    $region12: #{test_net_forward.1} parent=1 // pred_region
      _
    $region13: #{test_net_forward.1} parent=1 // pred_fallthru
      _
    // Predicated region
    $region14: #{test_net_forward.1} parent=1 // pred_check
      _
    $region15: #{test_net_forward.1} parent=1 // pred_check_branch
      %29 = sbr.rel (0) target = $region17
    $region16: #{test_net_forward.1} parent=1 // pred_region
      %s31 = ssub.s32 512, 512
      %32 = vsyncadd [#allocation7], %s31
      %s33 = sshll.u32 [#allocation6], 4
      %s34 = int_to_ptr.vmem [resolvable:$true] %s33
      %39 = dma.hbm_to_vmem [thread:$0]  %s3, 512, %s34, [#allocation7], 128, 128, 8
    $region17: #{test_net_forward.1} parent=1 // pred_fallthru
      _
    // Predicated region
    $region18: #{test_net_forward.1} parent=1 // pred_check
      _
    $region19: #{test_net_forward.1} parent=1 // pred_check_branch
      %41 = sbr.rel (0) target = $region21
    $region20: #{test_net_forward.1} parent=1 // pred_region
      _
    $region21: #{test_net_forward.1} parent=1 // pred_fallthru
      _
    // Predicated region
    $region22: #{test_net_forward.1} parent=1 // pred_check
      _
    $region23: #{test_net_forward.1} parent=1 // pred_check_branch
      %43 = sbr.rel (0) target = $region25
    $region24: #{test_net_forward.1} parent=1 // pred_region
      %44 = dma.done [#allocation5], 512
    $region25: #{test_net_forward.1} parent=1 // pred_fallthru
      _
    // Predicated region
    $region26: #{test_net_forward.1} parent=1 // pred_check
      _
    $region27: #{test_net_forward.1} parent=1 // pred_check_branch
      %46 = sbr.rel (0) target = $region29
    $region28: #{test_net_forward.1} parent=1 // pred_region
      %47 = dma.done [#allocation7], 512
    $region29: #{test_net_forward.1} parent=1 // pred_fallthru
      _
    %vm48 = vcmask 261120
    %49 = vst.msk [vmem:[#allocation2] sm:$0xff] %vm48, 0.0
    %50 = vst [vmem:[#allocation3] sm:$0xff] 0.0
    %51 = vst [vmem:[#allocation3 + $0x8] sm:$0xff] 0.0
    %52 = vst [vmem:[#allocation3 + $0x10] sm:$0xff] 0.0
    %53 = vst [vmem:[#allocation3 + $0x18] sm:$0xff] 0.0
    %54 = vst [vmem:[#allocation3 + $0x20] sm:$0xff] 0.0
    %55 = vst [vmem:[#allocation3 + $0x28] sm:$0xff] 0.0
    %56 = vst [vmem:[#allocation3 + $0x30] sm:$0xff] 0.0
    %57 = vst [vmem:[#allocation3 + $0x38] sm:$0xff] 0.0
    %58 = vst [vmem:[#allocation3 + $0x40] sm:$0xff] 0.0
    %59 = vst [vmem:[#allocation3 + $0x48] sm:$0xff] 0.0
    %60 = vst [vmem:[#allocation3 + $0x50] sm:$0xff] 0.0
    %61 = vst [vmem:[#allocation3 + $0x58] sm:$0xff] 0.0
    %62 = vst [vmem:[#allocation3 + $0x60] sm:$0xff] 0.0
    %63 = vst [vmem:[#allocation3 + $0x68] sm:$0xff] 0.0
    %64 = vst [vmem:[#allocation3 + $0x70] sm:$0xff] 0.0
    %65 = vst [vmem:[#allocation3 + $0x78] sm:$0xff] 0.0
    %v66 = vld [vmem:[%s0] sm:$0x1]
    %vm67 = vcmask 253952
    %68 = vst.msk [vmem:[#allocation2] sm:$0x1] %vm67, %v66
    %v69 = vld [vmem:[#allocation2] sm:$0xff]
    %v70 = vld [vmem:[#allocation4] sm:$0xff]
    %v71 = vld [vmem:[#allocation4 + $0x8] sm:$0xff]
    %v72 = vld [vmem:[#allocation4 + $0x10] sm:$0xff]
    %v73 = vld [vmem:[#allocation4 + $0x18] sm:$0xff]
    %v74 = vld [vmem:[%s2] sm:$0x1]
    %v76 = vlaneseq
    %v77 = vshrl.u32 %v76, 7
    %v78 = vsub.s32 0, %v77
    %v79 = vrot.slane %v74, %v78
    %v82 = vsel %vm48, %v69, 0
    %84 = vmatprep.subr.mxu0 0.0
    %85 = vmatpush1.msra.mxu0 %v70
    %86 = vmatprep.subr.mxu0 0.0
    %87 = vmatpush1.msra.mxu0 %v71
    %88 = vmatprep.subr.mxu0 0.0
    %89 = vmatpush1.msra.mxu0 %v72
    %90 = vmatprep.subr.mxu0 0.0
    %91 = vmatpush1.msra.mxu0 %v73
    %92 = vmatprep.subr.mxu0 0.0
    %93 = vmatpush1.msra.mxu0 0.0
    %94 = vmatprep.subr.mxu0 0.0
    %95 = vmatpush1.msra.mxu0 0.0
    %96 = vmatprep.subr.mxu0 0.0
    %97 = vmatpush1.msra.mxu0 0.0
    %98 = vmatprep.subr.mxu0 0.0
    %99 = vmatpush1.msra.mxu0 0.0
    %100 = vmatprep.subr.mxu0 0.0
    %101 = vmatpush1.msra.mxu0 0.0
    %102 = vmatprep.subr.mxu0 0.0
    %103 = vmatpush1.msra.mxu0 0.0
    %104 = vmatprep.subr.mxu0 0.0
    %105 = vmatpush1.msra.mxu0 0.0
    %106 = vmatprep.subr.mxu0 0.0
    %107 = vmatpush1.msra.mxu0 0.0
    %108 = vmatprep.subr.mxu0 0.0
    %109 = vmatpush1.msra.mxu0 0.0
    %110 = vmatprep.subr.mxu0 0.0
    %111 = vmatpush1.msra.mxu0 0.0
    %112 = vmatprep.subr.mxu0 0.0
    %113 = vmatpush1.msra.mxu0 0.0
    %114 = vmatprep.subr.mxu0 0.0
    %115 = vmatpush1.msra.mxu0 0.0
    %116 = vmatprep.subr.mxu0 0.0
    %117 = vmatpush1.msra.mxu0 0.0
    %118 = vmatprep.subr.mxu0 0.0
    %119 = vmatpush1.msra.mxu0 0.0
    %120 = vmatprep.subr.mxu0 0.0
    %121 = vmatpush1.msra.mxu0 0.0
    %122 = vmatprep.subr.mxu0 0.0
    %123 = vmatpush1.msra.mxu0 0.0
    %124 = vmatprep.subr.mxu0 0.0
    %125 = vmatpush1.msra.mxu0 0.0
    %126 = vmatprep.subr.mxu0 0.0
    %127 = vmatpush1.msra.mxu0 0.0
    %128 = vmatprep.subr.mxu0 0.0
    %129 = vmatpush1.msra.mxu0 0.0
    %130 = vmatprep.subr.mxu0 0.0
    %131 = vmatpush1.msra.mxu0 0.0
    %132 = vmatprep.subr.mxu0 0.0
    %133 = vmatpush1.msra.mxu0 0.0
    %134 = vmatprep.subr.mxu0 0.0
    %135 = vmatpush1.msra.mxu0 0.0
    %136 = vmatprep.subr.mxu0 0.0
    %137 = vmatpush1.msra.mxu0 0.0
    %138 = vmatprep.subr.mxu0 0.0
    %139 = vmatpush1.msra.mxu0 0.0
    %140 = vmatprep.subr.mxu0 0.0
    %141 = vmatpush1.msra.mxu0 0.0
    %142 = vmatprep.subr.mxu0 0.0
    %143 = vmatpush1.msra.mxu0 0.0
    %144 = vmatprep.subr.mxu0 0.0
    %145 = vmatpush1.msra.mxu0 0.0
    %146 = vmatprep.subr.mxu0 0.0
    %147 = vmatpush1.msra.mxu0 0.0
    %148 = vmatprep.mubr.f32.mxu0 0.0
    %149 = vmatmul.mubr.f32.gmra.mrb[0].mxu0 %v82
    %v150 = vpop.f32.mrb[0].mxu0
    %v151 = vadd.f32 %v79, %v150
    %v152 = vpop.f32.mrb[0].mxu0
    %153 = vdwg.mxu0
    %v154 = vld [vmem:[#allocation6] sm:$0xff]
    %155 = vst [vmem:[#allocation3] sm:$0xff] %v154
    %v156 = vld [vmem:[#allocation3] sm:$0xff]
    %v157 = vld [vmem:[#allocation3 + $0x8] sm:$0xff]
    %v158 = vld [vmem:[#allocation3 + $0x10] sm:$0xff]
    %v159 = vld [vmem:[#allocation3 + $0x18] sm:$0xff]
    %v160 = vld [vmem:[#allocation3 + $0x20] sm:$0xff]
    %v161 = vld [vmem:[#allocation3 + $0x28] sm:$0xff]
    %v162 = vld [vmem:[#allocation3 + $0x30] sm:$0xff]
    %v163 = vld [vmem:[#allocation3 + $0x38] sm:$0xff]
    %v164 = vld [vmem:[#allocation3 + $0x40] sm:$0xff]
    %v165 = vld [vmem:[#allocation3 + $0x48] sm:$0xff]
    %v166 = vld [vmem:[#allocation3 + $0x50] sm:$0xff]
    %v167 = vld [vmem:[#allocation3 + $0x58] sm:$0xff]
    %v168 = vld [vmem:[#allocation3 + $0x60] sm:$0xff]
    %v169 = vld [vmem:[#allocation3 + $0x68] sm:$0xff]
    %v170 = vld [vmem:[#allocation3 + $0x70] sm:$0xff]
    %v171 = vld [vmem:[#allocation3 + $0x78] sm:$0xff]
    %v172 = vld [vmem:[%s4] sm:$0x1]
    %v174 = vlaneseq
    %v175 = vshrl.u32 %v174, 7
    %v176 = vsub.s32 0, %v175
    %v177 = vrot.slane %v172, %v176
    %179 = vmatprep.subr.mxu0 0.0
    %180 = vmatpush1.msra.mxu0 %v156
    %181 = vmatprep.subr.mxu0 0.0
    %182 = vmatpush1.msra.mxu0 %v157
    %183 = vmatprep.subr.mxu0 0.0
    %184 = vmatpush1.msra.mxu0 %v158
    %185 = vmatprep.subr.mxu0 0.0
    %186 = vmatpush1.msra.mxu0 %v159
    %187 = vmatprep.subr.mxu0 0.0
    %188 = vmatpush1.msra.mxu0 %v160
    %189 = vmatprep.subr.mxu0 0.0
    %190 = vmatpush1.msra.mxu0 %v161
    %191 = vmatprep.subr.mxu0 0.0
    %192 = vmatpush1.msra.mxu0 %v162
    %193 = vmatprep.subr.mxu0 0.0
    %194 = vmatpush1.msra.mxu0 %v163
    %195 = vmatprep.subr.mxu0 0.0
    %196 = vmatpush1.msra.mxu0 %v164
    %197 = vmatprep.subr.mxu0 0.0
    %198 = vmatpush1.msra.mxu0 %v165
    %199 = vmatprep.subr.mxu0 0.0
    %200 = vmatpush1.msra.mxu0 %v166
    %201 = vmatprep.subr.mxu0 0.0
    %202 = vmatpush1.msra.mxu0 %v167
    %203 = vmatprep.subr.mxu0 0.0
    %204 = vmatpush1.msra.mxu0 %v168
    %205 = vmatprep.subr.mxu0 0.0
    %206 = vmatpush1.msra.mxu0 %v169
    %207 = vmatprep.subr.mxu0 0.0
    %208 = vmatpush1.msra.mxu0 %v170
    %209 = vmatprep.subr.mxu0 0.0
    %210 = vmatpush1.msra.mxu0 %v171
    %211 = vmatprep.subr.mxu0 0.0
    %212 = vmatpush1.msra.mxu0 0.0
    %213 = vmatprep.subr.mxu0 0.0
    %214 = vmatpush1.msra.mxu0 0.0
    %215 = vmatprep.subr.mxu0 0.0
    %216 = vmatpush1.msra.mxu0 0.0
    %217 = vmatprep.subr.mxu0 0.0
    %218 = vmatpush1.msra.mxu0 0.0
    %219 = vmatprep.subr.mxu0 0.0
    %220 = vmatpush1.msra.mxu0 0.0
    %221 = vmatprep.subr.mxu0 0.0
    %222 = vmatpush1.msra.mxu0 0.0
    %223 = vmatprep.subr.mxu0 0.0
    %224 = vmatpush1.msra.mxu0 0.0
    %225 = vmatprep.subr.mxu0 0.0
    %226 = vmatpush1.msra.mxu0 0.0
    %227 = vmatprep.subr.mxu0 0.0
    %228 = vmatpush1.msra.mxu0 0.0
    %229 = vmatprep.subr.mxu0 0.0
    %230 = vmatpush1.msra.mxu0 0.0
    %231 = vmatprep.subr.mxu0 0.0
    %232 = vmatpush1.msra.mxu0 0.0
    %233 = vmatprep.subr.mxu0 0.0
    %234 = vmatpush1.msra.mxu0 0.0
    %235 = vmatprep.subr.mxu0 0.0
    %236 = vmatpush1.msra.mxu0 0.0
    %237 = vmatprep.subr.mxu0 0.0
    %238 = vmatpush1.msra.mxu0 0.0
    %239 = vmatprep.subr.mxu0 0.0
    %240 = vmatpush1.msra.mxu0 0.0
    %241 = vmatprep.subr.mxu0 0.0
    %242 = vmatpush1.msra.mxu0 0.0
    %243 = vmatprep.mubr.f32.mxu0 0.0
    %244 = vmatmul.mubr.f32.gmra.mrb[0].mxu0 %v151
    %v245 = vpop.f32.mrb[0].mxu0
    %v246 = vadd.f32 %v177, %v245
    %v247 = vpop.f32.mrb[0].mxu0
    %248 = vdwg.mxu0
    %s249 = scalar_lea.vmem [#allocation6], 8
    %v250 = vld [vmem:[%s249] sm:$0xff]
    %251 = vst [vmem:[#allocation3] sm:$0xff] %v250
    %v252 = vld [vmem:[#allocation3] sm:$0xff]
    %v253 = vld [vmem:[#allocation3 + $0x8] sm:$0xff]
    %v254 = vld [vmem:[#allocation3 + $0x10] sm:$0xff]
    %v255 = vld [vmem:[#allocation3 + $0x18] sm:$0xff]
    %v256 = vld [vmem:[#allocation3 + $0x20] sm:$0xff]
    %v257 = vld [vmem:[#allocation3 + $0x28] sm:$0xff]
    %v258 = vld [vmem:[#allocation3 + $0x30] sm:$0xff]
    %v259 = vld [vmem:[#allocation3 + $0x38] sm:$0xff]
    %v260 = vld [vmem:[#allocation3 + $0x40] sm:$0xff]
    %v261 = vld [vmem:[#allocation3 + $0x48] sm:$0xff]
    %v262 = vld [vmem:[#allocation3 + $0x50] sm:$0xff]
    %v263 = vld [vmem:[#allocation3 + $0x58] sm:$0xff]
    %v264 = vld [vmem:[#allocation3 + $0x60] sm:$0xff]
    %v265 = vld [vmem:[#allocation3 + $0x68] sm:$0xff]
    %v266 = vld [vmem:[#allocation3 + $0x70] sm:$0xff]
    %v267 = vld [vmem:[#allocation3 + $0x78] sm:$0xff]
    %s268 = scalar_lea.vmem %s4, 1
    %v269 = vld [vmem:[%s268] sm:$0x1]
    %v271 = vlaneseq
    %v272 = vshrl.u32 %v271, 7
    %v273 = vsub.s32 0, %v272
    %v274 = vrot.slane %v269, %v273
    %276 = vmatprep.subr.mxu0 0.0
    %277 = vmatpush1.msra.mxu0 %v252
    %278 = vmatprep.subr.mxu0 0.0
    %279 = vmatpush1.msra.mxu0 %v253
    %280 = vmatprep.subr.mxu0 0.0
    %281 = vmatpush1.msra.mxu0 %v254
    %282 = vmatprep.subr.mxu0 0.0
    %283 = vmatpush1.msra.mxu0 %v255
    %284 = vmatprep.subr.mxu0 0.0
    %285 = vmatpush1.msra.mxu0 %v256
    %286 = vmatprep.subr.mxu0 0.0
    %287 = vmatpush1.msra.mxu0 %v257
    %288 = vmatprep.subr.mxu0 0.0
    %289 = vmatpush1.msra.mxu0 %v258
    %290 = vmatprep.subr.mxu0 0.0
    %291 = vmatpush1.msra.mxu0 %v259
    %292 = vmatprep.subr.mxu0 0.0
    %293 = vmatpush1.msra.mxu0 %v260
    %294 = vmatprep.subr.mxu0 0.0
    %295 = vmatpush1.msra.mxu0 %v261
    %296 = vmatprep.subr.mxu0 0.0
    %297 = vmatpush1.msra.mxu0 %v262
    %298 = vmatprep.subr.mxu0 0.0
    %299 = vmatpush1.msra.mxu0 %v263
    %300 = vmatprep.subr.mxu0 0.0
    %301 = vmatpush1.msra.mxu0 %v264
    %302 = vmatprep.subr.mxu0 0.0
    %303 = vmatpush1.msra.mxu0 %v265
    %304 = vmatprep.subr.mxu0 0.0
    %305 = vmatpush1.msra.mxu0 %v266
    %306 = vmatprep.subr.mxu0 0.0
    %307 = vmatpush1.msra.mxu0 %v267
    %308 = vmatprep.subr.mxu0 0.0
    %309 = vmatpush1.msra.mxu0 0.0
    %310 = vmatprep.subr.mxu0 0.0
    %311 = vmatpush1.msra.mxu0 0.0
    %312 = vmatprep.subr.mxu0 0.0
    %313 = vmatpush1.msra.mxu0 0.0
    %314 = vmatprep.subr.mxu0 0.0
    %315 = vmatpush1.msra.mxu0 0.0
    %316 = vmatprep.subr.mxu0 0.0
    %317 = vmatpush1.msra.mxu0 0.0
    %318 = vmatprep.subr.mxu0 0.0
    %319 = vmatpush1.msra.mxu0 0.0
    %320 = vmatprep.subr.mxu0 0.0
    %321 = vmatpush1.msra.mxu0 0.0
    %322 = vmatprep.subr.mxu0 0.0
    %323 = vmatpush1.msra.mxu0 0.0
    %324 = vmatprep.subr.mxu0 0.0
    %325 = vmatpush1.msra.mxu0 0.0
    %326 = vmatprep.subr.mxu0 0.0
    %327 = vmatpush1.msra.mxu0 0.0
    %328 = vmatprep.subr.mxu0 0.0
    %329 = vmatpush1.msra.mxu0 0.0
    %330 = vmatprep.subr.mxu0 0.0
    %331 = vmatpush1.msra.mxu0 0.0
    %332 = vmatprep.subr.mxu0 0.0
    %333 = vmatpush1.msra.mxu0 0.0
    %334 = vmatprep.subr.mxu0 0.0
    %335 = vmatpush1.msra.mxu0 0.0
    %336 = vmatprep.subr.mxu0 0.0
    %337 = vmatpush1.msra.mxu0 0.0
    %338 = vmatprep.subr.mxu0 0.0
    %339 = vmatpush1.msra.mxu0 0.0
    %340 = vmatprep.mubr.f32.mxu0 0.0
    %341 = vmatmul.mubr.f32.gmra.mrb[0].mxu0 %v246
    %v342 = vpop.f32.mrb[0].mxu0
    %v343 = vadd.f32 %v274, %v342
    %v344 = vpop.f32.mrb[0].mxu0
    %345 = vdwg.mxu0
    %s346 = scalar_lea.vmem [#allocation6], 16
    %v347 = vld [vmem:[%s346] sm:$0xff]
    %348 = vst [vmem:[#allocation3] sm:$0xff] %v347
    %v349 = vld [vmem:[#allocation3] sm:$0xff]
    %v350 = vld [vmem:[#allocation3 + $0x8] sm:$0xff]
    %v351 = vld [vmem:[#allocation3 + $0x10] sm:$0xff]
    %v352 = vld [vmem:[#allocation3 + $0x18] sm:$0xff]
    %v353 = vld [vmem:[#allocation3 + $0x20] sm:$0xff]
    %v354 = vld [vmem:[#allocation3 + $0x28] sm:$0xff]
    %v355 = vld [vmem:[#allocation3 + $0x30] sm:$0xff]
    %v356 = vld [vmem:[#allocation3 + $0x38] sm:$0xff]
    %v357 = vld [vmem:[#allocation3 + $0x40] sm:$0xff]
    %v358 = vld [vmem:[#allocation3 + $0x48] sm:$0xff]
    %v359 = vld [vmem:[#allocation3 + $0x50] sm:$0xff]
    %v360 = vld [vmem:[#allocation3 + $0x58] sm:$0xff]
    %v361 = vld [vmem:[#allocation3 + $0x60] sm:$0xff]
    %v362 = vld [vmem:[#allocation3 + $0x68] sm:$0xff]
    %v363 = vld [vmem:[#allocation3 + $0x70] sm:$0xff]
    %v364 = vld [vmem:[#allocation3 + $0x78] sm:$0xff]
    %s365 = scalar_lea.vmem %s4, 2
    %v366 = vld [vmem:[%s365] sm:$0x1]
    %v368 = vlaneseq
    %v369 = vshrl.u32 %v368, 7
    %v370 = vsub.s32 0, %v369
    %v371 = vrot.slane %v366, %v370
    %373 = vmatprep.subr.mxu0 0.0
    %374 = vmatpush1.msra.mxu0 %v349
    %375 = vmatprep.subr.mxu0 0.0
    %376 = vmatpush1.msra.mxu0 %v350
    %377 = vmatprep.subr.mxu0 0.0
    %378 = vmatpush1.msra.mxu0 %v351
    %379 = vmatprep.subr.mxu0 0.0
    %380 = vmatpush1.msra.mxu0 %v352
    %381 = vmatprep.subr.mxu0 0.0
    %382 = vmatpush1.msra.mxu0 %v353
    %383 = vmatprep.subr.mxu0 0.0
    %384 = vmatpush1.msra.mxu0 %v354
    %385 = vmatprep.subr.mxu0 0.0
    %386 = vmatpush1.msra.mxu0 %v355
    %387 = vmatprep.subr.mxu0 0.0
    %388 = vmatpush1.msra.mxu0 %v356
    %389 = vmatprep.subr.mxu0 0.0
    %390 = vmatpush1.msra.mxu0 %v357
    %391 = vmatprep.subr.mxu0 0.0
    %392 = vmatpush1.msra.mxu0 %v358
    %393 = vmatprep.subr.mxu0 0.0
    %394 = vmatpush1.msra.mxu0 %v359
    %395 = vmatprep.subr.mxu0 0.0
    %396 = vmatpush1.msra.mxu0 %v360
    %397 = vmatprep.subr.mxu0 0.0
    %398 = vmatpush1.msra.mxu0 %v361
    %399 = vmatprep.subr.mxu0 0.0
    %400 = vmatpush1.msra.mxu0 %v362
    %401 = vmatprep.subr.mxu0 0.0
    %402 = vmatpush1.msra.mxu0 %v363
    %403 = vmatprep.subr.mxu0 0.0
    %404 = vmatpush1.msra.mxu0 %v364
    %405 = vmatprep.subr.mxu0 0.0
    %406 = vmatpush1.msra.mxu0 0.0
    %407 = vmatprep.subr.mxu0 0.0
    %408 = vmatpush1.msra.mxu0 0.0
    %409 = vmatprep.subr.mxu0 0.0
    %410 = vmatpush1.msra.mxu0 0.0
    %411 = vmatprep.subr.mxu0 0.0
    %412 = vmatpush1.msra.mxu0 0.0
    %413 = vmatprep.subr.mxu0 0.0
    %414 = vmatpush1.msra.mxu0 0.0
    %415 = vmatprep.subr.mxu0 0.0
    %416 = vmatpush1.msra.mxu0 0.0
    %417 = vmatprep.subr.mxu0 0.0
    %418 = vmatpush1.msra.mxu0 0.0
    %419 = vmatprep.subr.mxu0 0.0
    %420 = vmatpush1.msra.mxu0 0.0
    %421 = vmatprep.subr.mxu0 0.0
    %422 = vmatpush1.msra.mxu0 0.0
    %423 = vmatprep.subr.mxu0 0.0
    %424 = vmatpush1.msra.mxu0 0.0
    %425 = vmatprep.subr.mxu0 0.0
    %426 = vmatpush1.msra.mxu0 0.0
    %427 = vmatprep.subr.mxu0 0.0
    %428 = vmatpush1.msra.mxu0 0.0
    %429 = vmatprep.subr.mxu0 0.0
    %430 = vmatpush1.msra.mxu0 0.0
    %431 = vmatprep.subr.mxu0 0.0
    %432 = vmatpush1.msra.mxu0 0.0
    %433 = vmatprep.subr.mxu0 0.0
    %434 = vmatpush1.msra.mxu0 0.0
    %435 = vmatprep.subr.mxu0 0.0
    %436 = vmatpush1.msra.mxu0 0.0
    %437 = vmatprep.mubr.f32.mxu0 0.0
    %438 = vmatmul.mubr.f32.gmra.mrb[0].mxu0 %v343
    %v439 = vpop.f32.mrb[0].mxu0
    %v440 = vadd.f32 %v371, %v439
    %v441 = vpop.f32.mrb[0].mxu0
    %442 = vdwg.mxu0
    %s443 = scalar_lea.vmem [#allocation6], 24
    %v444 = vld [vmem:[%s443] sm:$0xff]
    %445 = vst [vmem:[#allocation3] sm:$0xff] %v444
    %v446 = vld [vmem:[#allocation3] sm:$0xff]
    %v447 = vld [vmem:[#allocation3 + $0x8] sm:$0xff]
    %v448 = vld [vmem:[#allocation3 + $0x10] sm:$0xff]
    %v449 = vld [vmem:[#allocation3 + $0x18] sm:$0xff]
    %v450 = vld [vmem:[#allocation3 + $0x20] sm:$0xff]
    %v451 = vld [vmem:[#allocation3 + $0x28] sm:$0xff]
    %v452 = vld [vmem:[#allocation3 + $0x30] sm:$0xff]
    %v453 = vld [vmem:[#allocation3 + $0x38] sm:$0xff]
    %v454 = vld [vmem:[#allocation3 + $0x40] sm:$0xff]
    %v455 = vld [vmem:[#allocation3 + $0x48] sm:$0xff]
    %v456 = vld [vmem:[#allocation3 + $0x50] sm:$0xff]
    %v457 = vld [vmem:[#allocation3 + $0x58] sm:$0xff]
    %v458 = vld [vmem:[#allocation3 + $0x60] sm:$0xff]
    %v459 = vld [vmem:[#allocation3 + $0x68] sm:$0xff]
    %v460 = vld [vmem:[#allocation3 + $0x70] sm:$0xff]
    %v461 = vld [vmem:[#allocation3 + $0x78] sm:$0xff]
    %s462 = scalar_lea.vmem %s4, 3
    %v463 = vld [vmem:[%s462] sm:$0x1]
    %v465 = vlaneseq
    %v466 = vshrl.u32 %v465, 7
    %v467 = vsub.s32 0, %v466
    %v468 = vrot.slane %v463, %v467
    %470 = vmatprep.subr.mxu0 0.0
    %471 = vmatpush1.msra.mxu0 %v446
    %472 = vmatprep.subr.mxu0 0.0
    %473 = vmatpush1.msra.mxu0 %v447
    %474 = vmatprep.subr.mxu0 0.0
    %475 = vmatpush1.msra.mxu0 %v448
    %476 = vmatprep.subr.mxu0 0.0
    %477 = vmatpush1.msra.mxu0 %v449
    %478 = vmatprep.subr.mxu0 0.0
    %479 = vmatpush1.msra.mxu0 %v450
    %480 = vmatprep.subr.mxu0 0.0
    %481 = vmatpush1.msra.mxu0 %v451
    %482 = vmatprep.subr.mxu0 0.0
    %483 = vmatpush1.msra.mxu0 %v452
    %484 = vmatprep.subr.mxu0 0.0
    %485 = vmatpush1.msra.mxu0 %v453
    %486 = vmatprep.subr.mxu0 0.0
    %487 = vmatpush1.msra.mxu0 %v454
    %488 = vmatprep.subr.mxu0 0.0
    %489 = vmatpush1.msra.mxu0 %v455
    %490 = vmatprep.subr.mxu0 0.0
    %491 = vmatpush1.msra.mxu0 %v456
    %492 = vmatprep.subr.mxu0 0.0
    %493 = vmatpush1.msra.mxu0 %v457
    %494 = vmatprep.subr.mxu0 0.0
    %495 = vmatpush1.msra.mxu0 %v458
    %496 = vmatprep.subr.mxu0 0.0
    %497 = vmatpush1.msra.mxu0 %v459
    %498 = vmatprep.subr.mxu0 0.0
    %499 = vmatpush1.msra.mxu0 %v460
    %500 = vmatprep.subr.mxu0 0.0
    %501 = vmatpush1.msra.mxu0 %v461
    %502 = vmatprep.subr.mxu0 0.0
    %503 = vmatpush1.msra.mxu0 0.0
    %504 = vmatprep.subr.mxu0 0.0
    %505 = vmatpush1.msra.mxu0 0.0
    %506 = vmatprep.subr.mxu0 0.0
    %507 = vmatpush1.msra.mxu0 0.0
    %508 = vmatprep.subr.mxu0 0.0
    %509 = vmatpush1.msra.mxu0 0.0
    %510 = vmatprep.subr.mxu0 0.0
    %511 = vmatpush1.msra.mxu0 0.0
    %512 = vmatprep.subr.mxu0 0.0
    %513 = vmatpush1.msra.mxu0 0.0
    %514 = vmatprep.subr.mxu0 0.0
    %515 = vmatpush1.msra.mxu0 0.0
    %516 = vmatprep.subr.mxu0 0.0
    %517 = vmatpush1.msra.mxu0 0.0
    %518 = vmatprep.subr.mxu0 0.0
    %519 = vmatpush1.msra.mxu0 0.0
    %520 = vmatprep.subr.mxu0 0.0
    %521 = vmatpush1.msra.mxu0 0.0
    %522 = vmatprep.subr.mxu0 0.0
    %523 = vmatpush1.msra.mxu0 0.0
    %524 = vmatprep.subr.mxu0 0.0
    %525 = vmatpush1.msra.mxu0 0.0
    %526 = vmatprep.subr.mxu0 0.0
    %527 = vmatpush1.msra.mxu0 0.0
    %528 = vmatprep.subr.mxu0 0.0
    %529 = vmatpush1.msra.mxu0 0.0
    %530 = vmatprep.subr.mxu0 0.0
    %531 = vmatpush1.msra.mxu0 0.0
    %532 = vmatprep.subr.mxu0 0.0
    %533 = vmatpush1.msra.mxu0 0.0
    %534 = vmatprep.mubr.f32.mxu0 0.0
    %535 = vmatmul.mubr.f32.gmra.mrb[0].mxu0 %v440
    %v536 = vpop.f32.mrb[0].mxu0
    %v537 = vadd.f32 %v468, %v536
    %v538 = vpop.f32.mrb[0].mxu0
    %539 = vdwg.mxu0
    %540 = vst [vmem:[%s5] sm:$0xff] %v537
    // Predicated region
    $region30: #{test_net_forward.1} parent=1 // pred_check
      _
    $region31: #{test_net_forward.1} parent=1 // pred_check_branch
      %542 = sbr.rel (0) target = $region33
    $region32: #{test_net_forward.1} parent=1 // pred_region
      _
    $region33: #{test_net_forward.1} parent=1 // pred_fallthru
      _
    // Predicated region
    $region34: #{test_net_forward.1} parent=1 // pred_check
      _
    $region35: #{test_net_forward.1} parent=1 // pred_check_branch
      %544 = sbr.rel (0) target = $region37
    $region36: #{test_net_forward.1} parent=1 // pred_region
      _
    $region37: #{test_net_forward.1} parent=1 // pred_fallthru
      _
    %545 = vsyncpa [#allocation5], 1
    %546 = vsyncpa [#allocation7], 1

</llo_original>
